<compile_context>
chip_gen: v5e
topology: v5e:2x2
jax: 0.10.0
libtpu: 0.0.40
codegen_flags: <defaults>
</compile_context>

<pallas_src>
import jax
import jax.numpy as jnp
import numpy as np
from jax.experimental import pallas as pl
from jax.experimental.pallas import tpu as pltpu

_TQ_MAX = 128   # query-tile rows
_TK_MAX = 256   # key-tile columns (lane axis during tanh)
_LANE = 128


def _additive_attn_kernel(valid_lens_ref,            # SMEM (B,), scalar prefetch
                          qw_ref,                     # (1, TQ, H)   f32
                          kwt_ref,                    # (1, H, TK)   f32
                          v_ref,                      # (1, TK, Dvp) f32
                          wv_ref,                     # (H, 1)       f32
                          out_ref,                    # (1, TQ, Dvp) f32
                          m_sc, l_sc, acc_sc):        # VMEM scratch
    b = pl.program_id(0)
    ki = pl.program_id(2)

    @pl.when(ki == 0)
    def _():
        m_sc[...] = jnp.full_like(m_sc, -jnp.inf)
        l_sc[...] = jnp.zeros_like(l_sc)
        acc_sc[...] = jnp.zeros_like(acc_sc)

    qw = qw_ref[0]                        # (TQ, H)
    kwt = kwt_ref[0]                      # (H, TK)
    v = v_ref[0]                          # (TK, Dvp)
    wv = wv_ref[...]                      # (H, 1)

    tq = qw.shape[0]
    tk = kwt.shape[1]

    # Additive features with K on the lane axis; tanh runs on the EUP.
    # TODO(synk): bf16 tanh path for v6e/v7x omitted (keeps f32 tolerance; v5e
    # has no bf16 VPU/EUP).
    feats = jnp.tanh(qw[:, :, None] + kwt[None, :, :])             # (TQ, H, TK)

    # w_v projection = VPU multiply + sublane (H) reduction — no N=1 matmul.
    scores = jnp.sum(feats * wv[None, :, :], axis=1)               # (TQ, TK)

    # Mask invalid key positions (matches torch masked_softmax, value -1e6).
    vlen = valid_lens_ref[b]
    col = ki * tk + jax.lax.broadcasted_iota(jnp.int32, (tq, tk), 1)
    scores = jnp.where(col < vlen, scores, jnp.float32(-1000000.0))

    # Online (flash-style) softmax across key tiles.
    m_prev = m_sc[...]
    m_new = jnp.maximum(m_prev, jnp.max(scores, axis=-1, keepdims=True))
    alpha = jnp.exp(m_prev - m_new)
    p = jnp.exp(scores - m_new)
    l_sc[...] = alpha * l_sc[...] + jnp.sum(p, axis=-1, keepdims=True)
    acc_sc[...] = alpha * acc_sc[...] + jnp.dot(
        p, v, preferred_element_type=jnp.float32)
    m_sc[...] = m_new

    # TODO(synk): dropout on attention weights omitted (eval-mode identity).

    @pl.when(ki == pl.num_programs(2) - 1)
    def _():
        inv_l = pl.reciprocal(l_sc[...], approx=True)              # EUP slot
        out_ref[0] = (acc_sc[...] * inv_l).astype(out_ref.dtype)


def _pad_dim(x, axis, multiple):
    pad = (-x.shape[axis]) % multiple
    if pad == 0:
        return x
    widths = [(0, 0)] * x.ndim
    widths[axis] = (0, pad)
    return jnp.pad(x, widths)


@jax.jit
def additive_attention(queries, keys, values, valid_lens, w_q, w_k, w_v):
    B, Q, _ = queries.shape
    _, K, _ = keys.shape
    Dv = values.shape[-1]
    H = w_q.shape[1]

    # Hoist the small projections to batched XLA matmuls; lay kW out as
    # (B, H, K) so the key axis is lane-major inside the kernel.
    qw = jnp.einsum('bqd,dh->bqh', queries, w_q).astype(jnp.float32)
    kwt = jnp.einsum('bkd,dh->bhk', keys, w_k).astype(jnp.float32)
    wv = w_v.astype(jnp.float32)
    v = values.astype(jnp.float32)

    # Tile sizes: single tile when the axis already fits, otherwise fixed
    # hardware-friendly tiles with zero padding. Padded key columns are masked
    # (col >= valid_len); padded query rows / value lanes are sliced off.
    if Q <= _TQ_MAX:
        tq = Q
    else:
        tq = _TQ_MAX
        qw = _pad_dim(qw, 1, tq)
    if K <= _TK_MAX:
        tk = K
    else:
        tk = _TK_MAX
        kwt = _pad_dim(kwt, 2, tk)
        v = _pad_dim(v, 1, tk)
    v = _pad_dim(v, 2, _LANE)            # lane-dense V loads / output stores

    Qp, Kp, Dvp = qw.shape[1], kwt.shape[2], v.shape[2]
    grid = (B, Qp // tq, Kp // tk)

    grid_spec = pltpu.PrefetchScalarGridSpec(
        num_scalar_prefetch=1,
        grid=grid,
        in_specs=[
            pl.BlockSpec((1, tq, H), lambda b, qi, ki, vl: (b, qi, 0)),
            pl.BlockSpec((1, H, tk), lambda b, qi, ki, vl: (b, 0, ki)),
            pl.BlockSpec((1, tk, Dvp), lambda b, qi, ki, vl: (b, ki, 0)),
            pl.BlockSpec((H, 1), lambda b, qi, ki, vl: (0, 0)),
        ],
        out_specs=pl.BlockSpec((1, tq, Dvp), lambda b, qi, ki, vl: (b, qi, 0)),
        scratch_shapes=[
            pltpu.VMEM((tq, 1), jnp.float32),     # running max m
            pltpu.VMEM((tq, 1), jnp.float32),     # running sum l
            pltpu.VMEM((tq, Dvp), jnp.float32),   # output accumulator
        ],
    )

    out = pl.pallas_call(
        _additive_attn_kernel,
        out_shape=jax.ShapeDtypeStruct((B, Qp, Dvp), jnp.float32),
        grid_spec=grid_spec,
        compiler_params=pltpu.CompilerParams(
            dimension_semantics=("parallel", "parallel", "arbitrary"),
            vmem_limit_bytes=32 * 1024 * 1024,
        ),
    )(valid_lens.astype(jnp.int32), qw, kwt, v, wv)

    return out[:, :Q, :Dv]


def _reference(queries, keys, values, valid_lens, w_q, w_k, w_v):
    qW = queries @ w_q                                          # (B, Q, H)
    kW = keys @ w_k                                             # (B, K, H)
    feats = jnp.tanh(qW[:, :, None, :] + kW[:, None, :, :])     # (B, Q, K, H)
    scores = jnp.squeeze(feats @ w_v, -1)                       # (B, Q, K)
    K = keys.shape[1]
    mask = jnp.arange(K)[None, None, :] < valid_lens[:, None, None]
    scores = jnp.where(mask, scores, -1000000.0)
    attn = jax.nn.softmax(scores, axis=-1)
    return attn @ values


if __name__ == "__main__":
    def run_case(B, Q, K, Dq, Dk, H, Dv, vlens, case):
        key = jax.random.fold_in(jax.random.PRNGKey(0), case)
        k0, k1, k2, k3, k4, k5 = jax.random.split(key, 6)
        queries = jax.random.normal(k0, (B, Q, Dq), dtype=jnp.float32)
        keys = jax.random.normal(k1, (B, K, Dk), dtype=jnp.float32)
        values = jax.random.normal(k2, (B, K, Dv), dtype=jnp.float32)
        valid_lens = jnp.array(vlens, dtype=jnp.int32)
        # Weights stored pre-transposed vs torch.nn.Linear.weight.
        w_q = jax.random.normal(k3, (Dq, H), dtype=jnp.float32) * 0.1
        w_k = jax.random.normal(k4, (Dk, H), dtype=jnp.float32) * 0.1
        w_v = jax.random.normal(k5, (H, 1), dtype=jnp.float32) * 0.1

        out = jax.block_until_ready(
            additive_attention(queries, keys, values, valid_lens, w_q, w_k, w_v))
        ref = _reference(queries, keys, values, valid_lens, w_q, w_k, w_v)
        # approx EUP reciprocal in the final normalization bounds relative
        # error to ~1e-4; everything else is f32.
        np.testing.assert_allclose(np.asarray(out), np.asarray(ref),
                                   rtol=2e-3, atol=2e-3)

    # Small shapes matching the module's typical usage.
    run_case(B=2, Q=4, K=8, Dq=16, Dk=8, H=32, Dv=8, vlens=[3, 6], case=0)
    # Larger shapes exercising Q/K tiling, online softmax, masking and padding.
    run_case(B=2, Q=160, K=300, Dq=16, Dk=8, H=32, Dv=8, vlens=[100, 300], case=1)

    print("KERNEL_OK")
</pallas_src>

<mosaic_0001>
module attributes {stable_mosaic.version = 11 : i64} {
  func.func @_additive_attn_kernel(%arg0: i32, %arg1: i32, %arg2: i32, %arg3: memref<2xi32, #tpu.memory_space<smem>>, %arg4: memref<1x4x32xf32, #tpu.memory_space<vmem>>, %arg5: memref<1x32x8xf32, #tpu.memory_space<vmem>>, %arg6: memref<1x8x128xf32, #tpu.memory_space<vmem>>, %arg7: memref<32x1xf32, #tpu.memory_space<vmem>>, %arg8: memref<1x4x128xf32, #tpu.memory_space<vmem>>, %arg9: memref<4x1xf32, #tpu.memory_space<vmem>>, %arg10: memref<4x1xf32, #tpu.memory_space<vmem>>, %arg11: memref<4x128xf32, #tpu.memory_space<vmem>>) attributes {dimension_semantics = [#tpu.dimension_semantics<parallel>, #tpu.dimension_semantics<parallel>, #tpu.dimension_semantics<arbitrary>], iteration_bounds = array<i64: 2, 1, 1>, scalar_prefetch = 1 : i64, scratch_operands = 3 : i64, tpu.core_type = #tpu.core_type<tc>, window_params = [{transform_indices = @transform_0, window_bounds = array<i64: 1, 4, 32>}, {transform_indices = @transform_1, window_bounds = array<i64: 1, 32, 8>}, {transform_indices = @transform_2, window_bounds = array<i64: 1, 8, 128>}, {pipeline_mode = #tpu.pipeline_mode<synchronous>, transform_indices = @transform_3, window_bounds = array<i64: 32, 1>}, {transform_indices = @transform_4, window_bounds = array<i64: 1, 4, 128>}]} {
    %c0_i32 = arith.constant 0 : i32
    %0 = arith.cmpi eq, %arg2, %c0_i32 : i32
    %1 = arith.extui %0 : i1 to i32
    %c0_i32_0 = arith.constant 0 : i32
    %2 = arith.cmpi ne, %1, %c0_i32_0 : i32
    scf.if %2 {
      %cst_29 = arith.constant 0xFF800000 : f32
      %55 = vector.broadcast %cst_29 : f32 to vector<4x1xf32>
      %c0_30 = arith.constant 0 : index
      %c0_31 = arith.constant 0 : index
      %56 = vector.load %arg9[%c0_30, %c0_31] : memref<4x1xf32, #tpu.memory_space<vmem>>, vector<4x1xf32>
      tpu.vector_store %arg9[%c0_30, %c0_31], %55 {strides = array<i32>} : memref<4x1xf32, #tpu.memory_space<vmem>>, vector<4x1xf32>,
      %cst_32 = arith.constant 0.000000e+00 : f32
      %57 = vector.broadcast %cst_32 : f32 to vector<4x1xf32>
      %c0_33 = arith.constant 0 : index
      %c0_34 = arith.constant 0 : index
      %58 = vector.load %arg10[%c0_33, %c0_34] : memref<4x1xf32, #tpu.memory_space<vmem>>, vector<4x1xf32>
      tpu.vector_store %arg10[%c0_33, %c0_34], %57 {strides = array<i32>} : memref<4x1xf32, #tpu.memory_space<vmem>>, vector<4x1xf32>,
      %cst_35 = arith.constant 0.000000e+00 : f32
      %59 = vector.broadcast %cst_35 : f32 to vector<4x128xf32>
      %c0_36 = arith.constant 0 : index
      %c0_37 = arith.constant 0 : index
      %60 = vector.load %arg11[%c0_36, %c0_37] : memref<4x128xf32, #tpu.memory_space<vmem>>, vector<4x128xf32>
      tpu.vector_store %arg11[%c0_36, %c0_37], %59 {strides = array<i32>} : memref<4x128xf32, #tpu.memory_space<vmem>>, vector<4x128xf32>,
    } else {
    }
    %c0 = arith.constant 0 : index
    %c0_1 = arith.constant 0 : index
    %c0_2 = arith.constant 0 : index
    %3 = vector.load %arg4[%c0, %c0_1, %c0_2] : memref<1x4x32xf32, #tpu.memory_space<vmem>>, vector<1x4x32xf32>
    %4 = vector.shape_cast %3 : vector<1x4x32xf32> to vector<4x32xf32>
    %c0_3 = arith.constant 0 : index
    %c0_4 = arith.constant 0 : index
    %c0_5 = arith.constant 0 : index
    %5 = vector.load %arg5[%c0_3, %c0_4, %c0_5] : memref<1x32x8xf32, #tpu.memory_space<vmem>>, vector<1x32x8xf32>
    %6 = vector.shape_cast %5 : vector<1x32x8xf32> to vector<32x8xf32>
    %c0_6 = arith.constant 0 : index
    %c0_7 = arith.constant 0 : index
    %c0_8 = arith.constant 0 : index
    %7 = vector.load %arg6[%c0_6, %c0_7, %c0_8] : memref<1x8x128xf32, #tpu.memory_space<vmem>>, vector<1x8x128xf32>
    %8 = vector.shape_cast %7 : vector<1x8x128xf32> to vector<8x128xf32>
    %c0_9 = arith.constant 0 : index
    %c0_10 = arith.constant 0 : index
    %9 = vector.load %arg7[%c0_9, %c0_10] : memref<32x1xf32, #tpu.memory_space<vmem>>, vector<32x1xf32>
    %10 = vector.shape_cast %4 : vector<4x32xf32> to vector<4x32x1xf32>
    %11 = vector.shape_cast %6 : vector<32x8xf32> to vector<1x32x8xf32>
    %12 = vector.broadcast %10 : vector<4x32x1xf32> to vector<4x32x8xf32>
    %13 = vector.broadcast %11 : vector<1x32x8xf32> to vector<4x32x8xf32>
    %14 = arith.addf %12, %13 : vector<4x32x8xf32>
    %15 = math.tanh %14 : vector<4x32x8xf32>
    %16 = vector.shape_cast %9 : vector<32x1xf32> to vector<1x32x1xf32>
    %17 = vector.broadcast %16 : vector<1x32x1xf32> to vector<4x32x8xf32>
    %18 = arith.mulf %15, %17 : vector<4x32x8xf32>
    %cst = arith.constant dense<0.000000e+00> : vector<4x8xf32>
    %19 = vector.multi_reduction <add>, %18, %cst [1] : vector<4x32x8xf32> to vector<4x8xf32>
    %20 = arith.index_cast %arg0 : i32 to index
    %21 = memref.load %arg3[%20] : memref<2xi32, #tpu.memory_space<smem>>
    %c8_i32 = arith.constant 8 : i32
    %22 = arith.muli %arg2, %c8_i32 : i32
    %23 = tpu.iota {dimensions = array<i32: 1>} : vector<4x8xi32>
    %24 = vector.broadcast %22 : i32 to vector<4x8xi32>
    %25 = arith.addi %24, %23 : vector<4x8xi32>
    %26 = vector.broadcast %21 : i32 to vector<4x8xi32>
    %27 = arith.cmpi slt, %25, %26 : vector<4x8xi32>
    %cst_11 = arith.constant -1.000000e+06 : f32
    %28 = vector.broadcast %cst_11 : f32 to vector<4x8xf32>
    %29 = arith.select %27, %19, %28 : vector<4x8xi1>, vector<4x8xf32>
    %c0_12 = arith.constant 0 : index
    %c0_13 = arith.constant 0 : index
    %30 = vector.load %arg9[%c0_12, %c0_13] : memref<4x1xf32, #tpu.memory_space<vmem>>, vector<4x1xf32>
    %cst_14 = arith.constant dense<0xFF800000> : vector<4xf32>
    %31 = vector.multi_reduction <maximumf>, %29, %cst_14 [1] : vector<4x8xf32> to vector<4xf32>
    %32 = vector.shape_cast %31 : vector<4xf32> to vector<4x1xf32>
    %33 = arith.maximumf %30, %32 : vector<4x1xf32>
    %34 = arith.subf %30, %33 : vector<4x1xf32>
    %35 = math.exp %34 : vector<4x1xf32>
    %36 = vector.broadcast %33 : vector<4x1xf32> to vector<4x8xf32>
    %37 = arith.subf %29, %36 : vector<4x8xf32>
    %38 = math.exp %37 : vector<4x8xf32>
    %c0_15 = arith.constant 0 : index
    %c0_16 = arith.constant 0 : index
    %39 = vector.load %arg10[%c0_15, %c0_16] : memref<4x1xf32, #tpu.memory_space<vmem>>, vector<4x1xf32>
    %40 = arith.mulf %35, %39 : vector<4x1xf32>
    %cst_17 = arith.constant dense<0.000000e+00> : vector<4xf32>
    %41 = vector.multi_reduction <add>, %38, %cst_17 [1] : vector<4x8xf32> to vector<4xf32>
    %42 = vector.shape_cast %41 : vector<4xf32> to vector<4x1xf32>
    %43 = arith.addf %40, %42 : vector<4x1xf32>
    %c0_18 = arith.constant 0 : index
    %c0_19 = arith.constant 0 : index
    %44 = vector.load %arg10[%c0_18, %c0_19] : memref<4x1xf32, #tpu.memory_space<vmem>>, vector<4x1xf32>
    tpu.vector_store %arg10[%c0_18, %c0_19], %43 {strides = array<i32>} : memref<4x1xf32, #tpu.memory_space<vmem>>, vector<4x1xf32>,
    %c0_20 = arith.constant 0 : index
    %c0_21 = arith.constant 0 : index
    %45 = vector.load %arg11[%c0_20, %c0_21] : memref<4x128xf32, #tpu.memory_space<vmem>>, vector<4x128xf32>
    %46 = vector.broadcast %35 : vector<4x1xf32> to vector<4x128xf32>
    %47 = arith.mulf %46, %45 : vector<4x128xf32>
    %cst_22 = arith.constant dense<0.000000e+00> : vector<4x128xf32>
    %48 = tpu.matmul %38, %8, %cst_22 {dimension_numbers = #tpu.dot_dimension_numbers<[1], [0], [0], [1], [0, 0, 1, 1], [], []>} : vector<4x8xf32>, vector<8x128xf32>, vector<4x128xf32> -> vector<4x128xf32>
    %49 = arith.addf %47, %48 : vector<4x128xf32>
    %c0_23 = arith.constant 0 : index
    %c0_24 = arith.constant 0 : index
    %50 = vector.load %arg11[%c0_23, %c0_24] : memref<4x128xf32, #tpu.memory_space<vmem>>, vector<4x128xf32>
    tpu.vector_store %arg11[%c0_23, %c0_24], %49 {strides = array<i32>} : memref<4x128xf32, #tpu.memory_space<vmem>>, vector<4x128xf32>,
    %c0_25 = arith.constant 0 : index
    %c0_26 = arith.constant 0 : index
    %51 = vector.load %arg9[%c0_25, %c0_26] : memref<4x1xf32, #tpu.memory_space<vmem>>, vector<4x1xf32>
    tpu.vector_store %arg9[%c0_25, %c0_26], %33 {strides = array<i32>} : memref<4x1xf32, #tpu.memory_space<vmem>>, vector<4x1xf32>,
    %c0_i32_27 = arith.constant 0 : i32
    %52 = arith.cmpi eq, %arg2, %c0_i32_27 : i32
    %53 = arith.extui %52 : i1 to i32
    %c0_i32_28 = arith.constant 0 : i32
    %54 = arith.cmpi ne, %53, %c0_i32_28 : i32
    scf.if %54 {
      %c0_29 = arith.constant 0 : index
      %c0_30 = arith.constant 0 : index
      %55 = vector.load %arg10[%c0_29, %c0_30] : memref<4x1xf32, #tpu.memory_space<vmem>>, vector<4x1xf32>
      %56 = tpu.reciprocal %55 {approx = true} : vector<4x1xf32> -> vector<4x1xf32>
      %c0_31 = arith.constant 0 : index
      %c0_32 = arith.constant 0 : index
      %57 = vector.load %arg11[%c0_31, %c0_32] : memref<4x128xf32, #tpu.memory_space<vmem>>, vector<4x128xf32>
      %58 = vector.broadcast %56 : vector<4x1xf32> to vector<4x128xf32>
      %59 = arith.mulf %57, %58 : vector<4x128xf32>
      %c0_33 = arith.constant 0 : index
      %c0_34 = arith.constant 0 : index
      %c0_35 = arith.constant 0 : index
      %60 = vector.load %arg8[%c0_33, %c0_34, %c0_35] : memref<1x4x128xf32, #tpu.memory_space<vmem>>, vector<1x4x128xf32>
      %61 = vector.shape_cast %60 : vector<1x4x128xf32> to vector<4x128xf32>
      %62 = vector.shape_cast %59 : vector<4x128xf32> to vector<1x4x128xf32>
      tpu.vector_store %arg8[%c0_33, %c0_34, %c0_35], %62 {strides = array<i32>} : memref<1x4x128xf32, #tpu.memory_space<vmem>>, vector<1x4x128xf32>,
    } else {
    }
    return
  }
  func.func @transform_0(%arg0: i32, %arg1: i32, %arg2: i32, %arg3: memref<2xi32, #tpu.memory_space<smem>>) -> (i32, i32, i32) {
    %c0_i32 = arith.constant 0 : i32
    %c0_i32_0 = arith.constant 0 : i32
    return %arg0, %arg1, %c0_i32 : i32, i32, i32
  }
  func.func @transform_1(%arg0: i32, %arg1: i32, %arg2: i32, %arg3: memref<2xi32, #tpu.memory_space<smem>>) -> (i32, i32, i32) {
    %c0_i32 = arith.constant 0 : i32
    %c0_i32_0 = arith.constant 0 : i32
    return %arg0, %c0_i32, %arg2 : i32, i32, i32
  }
  func.func @transform_2(%arg0: i32, %arg1: i32, %arg2: i32, %arg3: memref<2xi32, #tpu.memory_space<smem>>) -> (i32, i32, i32) {
    %c0_i32 = arith.constant 0 : i32
    %c0_i32_0 = arith.constant 0 : i32
    return %arg0, %arg2, %c0_i32 : i32, i32, i32
  }
  func.func @transform_3(%arg0: i32, %arg1: i32, %arg2: i32, %arg3: memref<2xi32, #tpu.memory_space<smem>>) -> (i32, i32) {
    %c0_i32 = arith.constant 0 : i32
    %c0_i32_0 = arith.constant 0 : i32
    %c0_i32_1 = arith.constant 0 : i32
    return %c0_i32, %c0_i32_0 : i32, i32
  }
  func.func @transform_4(%arg0: i32, %arg1: i32, %arg2: i32, %arg3: memref<2xi32, #tpu.memory_space<smem>>) -> (i32, i32, i32) {
    %c0_i32 = arith.constant 0 : i32
    %c0_i32_0 = arith.constant 0 : i32
    return %arg0, %arg1, %c0_i32 : i32, i32, i32
  }
}

</mosaic_0001>

<llo_original>
// kernel: additive_attention.1
$region0: #{additive_attention.1}
  #allocation0 [shape = 'u32[]', space=smem, size = 0x4, offset = 0x4, fixed_abs, tag = 'smem constant byte address 0x4 - core index']
  #allocation1 [shape = 'u32[72,128]{1,0:T(1,128)}', space=vmem, size = 0x9000, scoped, tag = 'internal scratch']
  #allocation2 [shape = 'f32[4,1]{1,0:T(4,128)}', space=vmem, size = 0x800, scoped, tag = 'scratch operand']
  #allocation3 [shape = 'f32[4,1]{1,0:T(4,128)}', space=vmem, size = 0x800, scoped, tag = 'scratch operand']
  #allocation4 [shape = 'f32[4,128]{1,0:T(4,128)}', space=vmem, size = 0x800, scoped, tag = 'scratch operand']
  #allocation5 [shape = 's32[1]{0}', space=sflag, size = 0x4, scoped, tag = 'scoped memory for additive_attention.1']
  #allocation6 [shape = 'u8[512]{0}', space=smem, size = 0x200, scoped, tag = 'prefetched SMEM operand 0']
  %s0 = inlined_call_operand.vmem [shape: s32[2], index: 0, kind: input, shape index: {}]
  %s1 = inlined_call_operand.vmem [shape: f32[2,4,32], index: 1, kind: input, shape index: {}]
  %s2 = inlined_call_operand.vmem [shape: f32[2,32,8], index: 2, kind: input, shape index: {}]
  %s3 = inlined_call_operand.vmem [shape: f32[2,8,128], index: 3, kind: input, shape index: {}]
  %s4 = inlined_call_operand.vmem [shape: f32[32,1], index: 4, kind: input, shape index: {}]
  %s5 = inlined_call_operand.hbm [shape: f32[2,4,128], index: 5, kind: output, shape index: {}]
  %s6 = sld [smem:[#allocation0]]
  $region57: #{additive_attention.1} parent=0
    _
  %s8 = ssub.s32 1, %s6
  %s9 = scalar_select 0, %s8, %s6
  %s11 = sshll.u32 %s0, 4
  %s12 = int_to_ptr.vmem [resolvable:$true] %s11
  %14 = dma.vmem_to_smem %s12, 16, [#allocation6], [#allocation5]
  %16 = dma.done [#allocation5], 16
  %17 = sfence
  $region1: #{additive_attention.1} parent=0
    #allocation7 [shape = 'u8[4096]{0}', space=vmem, size = 0x1000, scoped, tag = 'output window, operand 0']
    #allocation8 [shape = 's32[2]{0}', space=sflag, size = 0x8, scoped, tag = 'scoped memory for additive_attention.1']
    %18 = vsyncpa [#allocation8], 0
    %s19 = scalar_lea.sflag [#allocation8], 1
    %20 = vsyncpa %s19, 0
    loop: start=0, step=1, limit=4
    $region2: #{additive_attention.1} parent=1 // loop_pre_header
      _
    $region3: #{additive_attention.1} parent=1 // loop_header
      %s22 = sphi 0, %s26
      %p23 = scmp.ge.s32.totalorder %s22, 4
      %s29 = sphi 0, %s48
      %s30 = sphi 0, %s44
      %s31 = sphi 0, %s40
      %s32 = sphi 0, %s29
      %s33 = sphi 0, %s30
      %s34 = sphi 0, %s31
      %s35 = sphi 0, %s32
      %s36 = sphi 0, %s33
      %s37 = sphi 0, %s34
      %s53 = sphi 0, %s55
      %s56 = sphi 0, %s53
      %s57 = sphi 0, %s56
      %s73 = sphi 0, %s57
      %s81 = sphi 0, %s83
      %s84 = sphi 0, %s81
      %s85 = sphi 0, %s84
      %s101 = sphi 0, %s85
      %s109 = sphi 0, %s111
      %s112 = sphi 0, %s109
      %s113 = sphi 0, %s112
      %s129 = sphi 0, %s113
      %s133 = sphi 0, %s133
      %s135 = sphi 0, %s133
      %s136 = sphi 0, %s135
      %s150 = sphi 0, %s136
      %s158 = sphi 0, %s160
      %s161 = sphi 0, %s158
      %s162 = sphi 0, %s161
      %s178 = sphi 0, %s162
    $region4: #{additive_attention.1} parent=1 // loop_header_branch
      %25 = sbr.rel (%p23) target = $region8
    $region5: #{additive_attention.1} parent=1 // loop_body
      %s27 = ssub.s32 %s22, 1
      %s28 = ssub.s32 %s22, 2
      %s38 = sadd.s32 1, %s31
      %p39 = scmp.ge.s32.totalorder %s38, 1
      %s40 = scalar_select %p39, 0, %s38
      %s41 = sadd.s32 1, %s30
      %s42 = scalar_select %p39, %s41, %s30
      %p43 = scmp.ge.s32.totalorder %s42, 1
      %s44 = scalar_select %p43, 0, %s42
      %s45 = sadd.s32 1, %s29
      %s46 = scalar_select %p43, %s45, %s29
      %p47 = scmp.ge.s32.totalorder %s46, 2
      %s48 = scalar_select %p47, 0, %s46
      %s49 = ssub.s32 %s29, %s48
      %s50 = ssub.s32 %s30, %s44
      %s51 = sor.u32 %s49, %s50
      %p52 = scmp.eq.s32.totalorder %s51, 0
      %s54 = sadd.s32 %s53, 1
      %s55 = scalar_select %p52, %s53, %s54
      %p58 = pneg %p52
      %p59 = scmp.eq.s32.totalorder %s22, 1
      %p60 = por %p58, %p59
      %p61 = scmp.ne.s32.totalorder %s53, %s56
      %p62 = scmp.eq.s32.totalorder %s22, 0
      %p63 = por %p61, %p62
      %p64 = scmp.ne.s32.totalorder %s53, %s56
      %p65 = scmp.eq.s32.totalorder %s27, 1
      %p66 = por %p64, %p65
      %p67 = scmp.ne.s32.totalorder %s56, %s57
      %p68 = scmp.eq.s32.totalorder %s27, 0
      %p69 = por %p67, %p68
      %p70 = scmp.ne.s32.totalorder %s56, %s57
      %p71 = scmp.eq.s32.totalorder %s28, 1
      %p72 = por %p70, %p71
      %p74 = scmp.ne.s32.totalorder %s57, %s73
      %p75 = scmp.eq.s32.totalorder %s28, 0
      %p76 = por %p74, %p75
      %s77 = ssub.s32 %s29, %s48
      %s78 = ssub.s32 %s31, %s40
      %s79 = sor.u32 %s77, %s78
      %p80 = scmp.eq.s32.totalorder %s79, 0
      %s82 = sadd.s32 %s81, 1
      %s83 = scalar_select %p80, %s81, %s82
      %p86 = pneg %p80
      %p87 = scmp.eq.s32.totalorder %s22, 1
      %p88 = por %p86, %p87
      %p89 = scmp.ne.s32.totalorder %s81, %s84
      %p90 = scmp.eq.s32.totalorder %s22, 0
      %p91 = por %p89, %p90
      %p92 = scmp.ne.s32.totalorder %s81, %s84
      %p93 = scmp.eq.s32.totalorder %s27, 1
      %p94 = por %p92, %p93
      %p95 = scmp.ne.s32.totalorder %s84, %s85
      %p96 = scmp.eq.s32.totalorder %s27, 0
      %p97 = por %p95, %p96
      %p98 = scmp.ne.s32.totalorder %s84, %s85
      %p99 = scmp.eq.s32.totalorder %s28, 1
      %p100 = por %p98, %p99
      %p102 = scmp.ne.s32.totalorder %s85, %s101
      %p103 = scmp.eq.s32.totalorder %s28, 0
      %p104 = por %p102, %p103
      %s105 = ssub.s32 %s29, %s48
      %s106 = ssub.s32 %s31, %s40
      %s107 = sor.u32 %s105, %s106
      %p108 = scmp.eq.s32.totalorder %s107, 0
      %s110 = sadd.s32 %s109, 1
      %s111 = scalar_select %p108, %s109, %s110
      %p114 = pneg %p108
      %p115 = scmp.eq.s32.totalorder %s22, 1
      %p116 = por %p114, %p115
      %p117 = scmp.ne.s32.totalorder %s109, %s112
      %p118 = scmp.eq.s32.totalorder %s22, 0
      %p119 = por %p117, %p118
      %p120 = scmp.ne.s32.totalorder %s109, %s112
      %p121 = scmp.eq.s32.totalorder %s27, 1
      %p122 = por %p120, %p121
      %p123 = scmp.ne.s32.totalorder %s112, %s113
      %p124 = scmp.eq.s32.totalorder %s27, 0
      %p125 = por %p123, %p124
      %p126 = scmp.ne.s32.totalorder %s112, %s113
      %p127 = scmp.eq.s32.totalorder %s28, 1
      %p128 = por %p126, %p127
      %p130 = scmp.ne.s32.totalorder %s113, %s129
      %p131 = scmp.eq.s32.totalorder %s28, 0
      %p132 = por %p130, %p131
      %s134 = sadd.s32 %s133, 1
      %p137 = scmp.eq.s32.totalorder %s22, 1
      %p138 = scmp.ne.s32.totalorder %s133, %s135
      %p139 = scmp.eq.s32.totalorder %s22, 0
      %p140 = por %p138, %p139
      %p141 = scmp.ne.s32.totalorder %s133, %s135
      %p142 = scmp.eq.s32.totalorder %s27, 1
      %p143 = por %p141, %p142
      %p144 = scmp.ne.s32.totalorder %s135, %s136
      %p145 = scmp.eq.s32.totalorder %s27, 0
      %p146 = por %p144, %p145
      %p147 = scmp.ne.s32.totalorder %s135, %s136
      %p148 = scmp.eq.s32.totalorder %s28, 1
      %p149 = por %p147, %p148
      %p151 = scmp.ne.s32.totalorder %s136, %s150
      %p152 = scmp.eq.s32.totalorder %s28, 0
      %p153 = por %p151, %p152
      %s154 = ssub.s32 %s29, %s48
      %s155 = ssub.s32 %s30, %s44
      %s156 = sor.u32 %s154, %s155
      %p157 = scmp.eq.s32.totalorder %s156, 0
      %s159 = sadd.s32 %s158, 1
      %s160 = scalar_select %p157, %s158, %s159
      %p163 = pneg %p157
      %p164 = scmp.eq.s32.totalorder %s22, 1
      %p165 = por %p163, %p164
      %p166 = scmp.ne.s32.totalorder %s158, %s161
      %p167 = scmp.eq.s32.totalorder %s22, 0
      %p168 = por %p166, %p167
      %p169 = scmp.ne.s32.totalorder %s158, %s161
      %p170 = scmp.eq.s32.totalorder %s27, 1
      %p171 = por %p169, %p170
      %p172 = scmp.ne.s32.totalorder %s161, %s162
      %p173 = scmp.eq.s32.totalorder %s27, 0
      %p174 = por %p172, %p173
      %p175 = scmp.ne.s32.totalorder %s161, %s162
      %p176 = scmp.eq.s32.totalorder %s28, 1
      %p177 = por %p175, %p176
      %p179 = scmp.ne.s32.totalorder %s162, %s178
      %p180 = scmp.eq.s32.totalorder %s28, 0
      %p181 = por %p179, %p180
      %p182 = scmp.le.s32.totalorder 1, %s22
      %p183 = scmp.lt.s32.totalorder %s22, 3
      %p184 = pnand %p182, %p183
      %p185 = pneg %p184
      // Predicated region
      $region9: #{additive_attention.1} parent=5 // pred_check
        _
      $region10: #{additive_attention.1} parent=5 // pred_check_branch
        %187 = sbr.rel (%p184) target = $region12
      $region11: #{additive_attention.1} parent=5 // pred_region
        %s188 = ssub.s32 %s22, 1
        // Predicated region
        $region13: #{additive_attention.1} parent=11 // pred_check
          %p189 = pneg %p146
        $region14: #{additive_attention.1} parent=11 // pred_check_branch
          %191 = sbr.rel (%p189) target = $region16
        $region15: #{additive_attention.1} parent=11 // pred_region
          _
        $region16: #{additive_attention.1} parent=11 // pred_fallthru
          _
      $region12: #{additive_attention.1} parent=5 // pred_fallthru
        _
      %p192 = scmp.lt.s32.totalorder %s22, 2
      // Predicated region
      $region17: #{additive_attention.1} parent=5 // pred_check
        %p193 = pneg %p192
      $region18: #{additive_attention.1} parent=5 // pred_check_branch
        %195 = sbr.rel (%p193) target = $region20
      $region19: #{additive_attention.1} parent=5 // pred_region
        // Predicated region
        $region21: #{additive_attention.1} parent=19 // pred_check
          %p196 = pneg %p63
        $region22: #{additive_attention.1} parent=19 // pred_check_branch
          %198 = sbr.rel (%p196) target = $region24
        $region23: #{additive_attention.1} parent=19 // pred_region
          %p199 = scmp.lt.s32.totalorder %s29, 1
          %s200 = scalar_select %p199, %s29, 1
          %p201 = scmp.lt.s32.totalorder %s30, 0
          %s202 = scalar_select %p201, %s30, 0
          %s203 = sadd.s32 %s202, %s200
          %s204 = smul.addr %s203, 4
          %s205 = scalar_lea.vmem %s1, %s204
        $region24: #{additive_attention.1} parent=19 // pred_fallthru
          _
        // Predicated region
        $region25: #{additive_attention.1} parent=19 // pred_check
          %p206 = pneg %p91
        $region26: #{additive_attention.1} parent=19 // pred_check_branch
          %208 = sbr.rel (%p206) target = $region28
        $region27: #{additive_attention.1} parent=19 // pred_region
          %p209 = scmp.lt.s32.totalorder %s29, 1
          %s210 = scalar_select %p209, %s29, 1
          %p211 = scmp.lt.s32.totalorder %s31, 0
          %s212 = scalar_select %p211, %s31, 0
          %s213 = smul.addr %s210, 4
          %s214 = sadd.s32 %s212, %s213
          %s215 = smul.addr %s214, 8
          %s216 = scalar_lea.vmem %s2, %s215
        $region28: #{additive_attention.1} parent=19 // pred_fallthru
          _
        // Predicated region
        $region29: #{additive_attention.1} parent=19 // pred_check
          %p217 = pneg %p119
        $region30: #{additive_attention.1} parent=19 // pred_check_branch
          %219 = sbr.rel (%p217) target = $region32
        $region31: #{additive_attention.1} parent=19 // pred_region
          %p220 = scmp.lt.s32.totalorder %s29, 1
          %s221 = scalar_select %p220, %s29, 1
          %p222 = scmp.lt.s32.totalorder %s31, 0
          %s223 = scalar_select %p222, %s31, 0
          %s224 = sadd.s32 %s223, %s221
          %s225 = smul.addr %s224, 8
          %s226 = scalar_lea.vmem %s3, %s225
        $region32: #{additive_attention.1} parent=19 // pred_fallthru
          _
      $region20: #{additive_attention.1} parent=5 // pred_fallthru
        _
      %p227 = scmp.le.s32.totalorder 1, %s22
      %p228 = scmp.lt.s32.totalorder %s22, 3
      %p229 = pnand %p227, %p228
      %p230 = pneg %p229
      // Predicated region
      $region33: #{additive_attention.1} parent=5 // pred_check
        _
      $region34: #{additive_attention.1} parent=5 // pred_check_branch
        %232 = sbr.rel (%p229) target = $region36
      $region35: #{additive_attention.1} parent=5 // pred_region
        %s233 = ssub.s32 %s22, 1
        %p234 = scmp.lt.s32.totalorder %s32, 1
        %s235 = scalar_select %p234, %s32, 1
        %p236 = scmp.lt.s32.totalorder %s33, 0
        %s237 = scalar_select %p236, %s33, 0
        %s238 = sadd.s32 %s237, %s235
        %s239 = smul.addr %s238, 4
        %s240 = scalar_lea.vmem %s1, %s239
        %p241 = pneg %p69
        %p242 = pneg %p66
        %p243 = scmp.lt.s32.totalorder %s32, 1
        %s244 = scalar_select %p243, %s32, 1
        %p245 = scmp.lt.s32.totalorder %s34, 0
        %s246 = scalar_select %p245, %s34, 0
        %s247 = smul.addr %s244, 4
        %s248 = sadd.s32 %s246, %s247
        %s249 = smul.addr %s248, 8
        %s250 = scalar_lea.vmem %s2, %s249
        %p251 = pneg %p97
        %p252 = pneg %p94
        %p253 = scmp.lt.s32.totalorder %s32, 1
        %s254 = scalar_select %p253, %s32, 1
        %p255 = scmp.lt.s32.totalorder %s34, 0
        %s256 = scalar_select %p255, %s34, 0
        %s257 = sadd.s32 %s256, %s254
        %s258 = smul.addr %s257, 8
        %s259 = scalar_lea.vmem %s3, %s258
        %p260 = pneg %p125
        %p261 = pneg %p122
        %p262 = pneg %p146
        %p263 = pneg %p143
        %p264 = pneg %p174
        %p265 = pneg %p171
        %s266 = sand.u32 %s161, 1
        %s267 = scalar_lea.sflag [#allocation8], %s266
        %s268 = sand.u32 %s161, 1
        %s269 = smul.addr %s268, 4
        %s270 = scalar_lea.vmem [#allocation7], %s269
        %p271 = scmp.lt.s32.totalorder %s32, 1
        %s272 = scalar_select %p271, %s32, 1
        %p273 = scmp.lt.s32.totalorder %s33, 0
        %s274 = scalar_select %p273, %s33, 0
        %s275 = sadd.s32 %s274, %s272
        %s276 = smul.addr %s275, 4
        %s277 = scalar_lea.vmem %s1, %s276
        %p278 = scmp.lt.s32.totalorder %s32, 1
        %s279 = scalar_select %p278, %s32, 1
        %p280 = scmp.lt.s32.totalorder %s34, 0
        %s281 = scalar_select %p280, %s34, 0
        %s282 = smul.addr %s279, 4
        %s283 = sadd.s32 %s281, %s282
        %s284 = smul.addr %s283, 8
        %s285 = scalar_lea.vmem %s2, %s284
        %p286 = scmp.lt.s32.totalorder %s32, 1
        %s287 = scalar_select %p286, %s32, 1
        %p288 = scmp.lt.s32.totalorder %s34, 0
        %s289 = scalar_select %p288, %s34, 0
        %s290 = sadd.s32 %s289, %s287
        %s291 = smul.addr %s290, 8
        %s292 = scalar_lea.vmem %s3, %s291
        %p293 = scmp.eq.s32.totalorder %s34, 0
        // Predicated region
        $region37: #{additive_attention.1} parent=35 // pred_check
          %p294 = pneg %p293
        $region38: #{additive_attention.1} parent=35 // pred_check_branch
          %296 = sbr.rel (%p294) target = $region40
        $region39: #{additive_attention.1} parent=35 // pred_region
          %vm297 = vcmask 3072
          %298 = vst.msk [vmem:[#allocation2] sm:$0xf] %vm297, -inf
          %299 = vst.msk [vmem:[#allocation3] sm:$0xf] %vm297, 0.0
          %300 = vst [vmem:[#allocation4] sm:$0xf] 0.0
        $region40: #{additive_attention.1} parent=35 // pred_fallthru
          _
        %v301 = vld [vmem:[%s277] sm:$0xf]
        %v302 = vld [vmem:[%s285] sm:$0xff]
        %v303 = vld [vmem:[%s285 + $0x8] sm:$0xff]
        %v304 = vld [vmem:[%s285 + $0x10] sm:$0xff]
        %v305 = vld [vmem:[%s285 + $0x18] sm:$0xff]
        %v306 = vld [vmem:[%s292] sm:$0xff]
        %v307 = vld [vmem:[%s4] sm:$0xff]
        %v308 = vld [vmem:[%s4 + $0x8] sm:$0xff]
        %v309 = vld [vmem:[%s4 + $0x10] sm:$0xff]
        %v310 = vld [vmem:[%s4 + $0x18] sm:$0xff]
        %v311 = vperm.slane %v301, 0
        %v312 = vlaneseq
        %v313 = vshrl.u32 %v312, 7
        %315 = vset.pattern.permute.xlu0 %v313
        %316 = vperm.xlu0 %315, %v311
        %v317 = vpop.permute.xlu0 %316
        %v318 = vlaneseq
        %v319 = vshrl.u32 %v318, 7
        %v320 = vadd.s32 %v319, 8
        %321 = vset.pattern.permute.xlu0 %v320
        %322 = vperm.xlu0 %321, %v311
        %v323 = vpop.permute.xlu0 %322
        %v324 = vlaneseq
        %v325 = vshrl.u32 %v324, 7
        %v326 = vadd.s32 %v325, 16
        %327 = vset.pattern.permute.xlu0 %v326
        %328 = vperm.xlu0 %327, %v311
        %v329 = vpop.permute.xlu0 %328
        %v330 = vlaneseq
        %v331 = vshrl.u32 %v330, 7
        %v332 = vadd.s32 %v331, 24
        %333 = vset.pattern.permute.xlu0 %v332
        %334 = vperm.xlu0 %333, %v311
        %v335 = vpop.permute.xlu0 %334
        %v336 = vperm.slane %v301, 1
        %v337 = vlaneseq
        %v338 = vshrl.u32 %v337, 7
        %340 = vset.pattern.permute.xlu0 %v338
        %341 = vperm.xlu0 %340, %v336
        %v342 = vpop.permute.xlu0 %341
        %v343 = vlaneseq
        %v344 = vshrl.u32 %v343, 7
        %v345 = vadd.s32 %v344, 8
        %346 = vset.pattern.permute.xlu0 %v345
        %347 = vperm.xlu0 %346, %v336
        %v348 = vpop.permute.xlu0 %347
        %v349 = vlaneseq
        %v350 = vshrl.u32 %v349, 7
        %v351 = vadd.s32 %v350, 16
        %352 = vset.pattern.permute.xlu0 %v351
        %353 = vperm.xlu0 %352, %v336
        %v354 = vpop.permute.xlu0 %353
        %v355 = vlaneseq
        %v356 = vshrl.u32 %v355, 7
        %v357 = vadd.s32 %v356, 24
        %358 = vset.pattern.permute.xlu0 %v357
        %359 = vperm.xlu0 %358, %v336
        %v360 = vpop.permute.xlu0 %359
        %v361 = vperm.slane %v301, 2
        %v362 = vlaneseq
        %v363 = vshrl.u32 %v362, 7
        %365 = vset.pattern.permute.xlu0 %v363
        %366 = vperm.xlu0 %365, %v361
        %v367 = vpop.permute.xlu0 %366
        %v368 = vlaneseq
        %v369 = vshrl.u32 %v368, 7
        %v370 = vadd.s32 %v369, 8
        %371 = vset.pattern.permute.xlu0 %v370
        %372 = vperm.xlu0 %371, %v361
        %v373 = vpop.permute.xlu0 %372
        %v374 = vlaneseq
        %v375 = vshrl.u32 %v374, 7
        %v376 = vadd.s32 %v375, 16
        %377 = vset.pattern.permute.xlu0 %v376
        %378 = vperm.xlu0 %377, %v361
        %v379 = vpop.permute.xlu0 %378
        %v380 = vlaneseq
        %v381 = vshrl.u32 %v380, 7
        %v382 = vadd.s32 %v381, 24
        %383 = vset.pattern.permute.xlu0 %v382
        %384 = vperm.xlu0 %383, %v361
        %v385 = vpop.permute.xlu0 %384
        %v386 = vperm.slane %v301, 3
        %v387 = vlaneseq
        %v388 = vshrl.u32 %v387, 7
        %390 = vset.pattern.permute.xlu0 %v388
        %391 = vperm.xlu0 %390, %v386
        %v392 = vpop.permute.xlu0 %391
        %v393 = vlaneseq
        %v394 = vshrl.u32 %v393, 7
        %v395 = vadd.s32 %v394, 8
        %396 = vset.pattern.permute.xlu0 %v395
        %397 = vperm.xlu0 %396, %v386
        %v398 = vpop.permute.xlu0 %397
        %v399 = vlaneseq
        %v400 = vshrl.u32 %v399, 7
        %v401 = vadd.s32 %v400, 16
        %402 = vset.pattern.permute.xlu0 %v401
        %403 = vperm.xlu0 %402, %v386
        %v404 = vpop.permute.xlu0 %403
        %v405 = vlaneseq
        %v406 = vshrl.u32 %v405, 7
        %v407 = vadd.s32 %v406, 24
        %408 = vset.pattern.permute.xlu0 %v407
        %409 = vperm.xlu0 %408, %v386
        %v410 = vpop.permute.xlu0 %409
        %v411 = vadd.f32 %v317, %v302
        %v412 = vadd.f32 %v323, %v303
        %v413 = vadd.f32 %v329, %v304
        %v414 = vadd.f32 %v335, %v305
        %v415 = vadd.f32 %v342, %v302
        %v416 = vadd.f32 %v348, %v303
        %v417 = vadd.f32 %v354, %v304
        %v418 = vadd.f32 %v360, %v305
        %v419 = vadd.f32 %v367, %v302
        %v420 = vadd.f32 %v373, %v303
        %v421 = vadd.f32 %v379, %v304
        %v422 = vadd.f32 %v385, %v305
        %v423 = vadd.f32 %v392, %v302
        %v424 = vadd.f32 %v398, %v303
        %v425 = vadd.f32 %v404, %v304
        %v426 = vadd.f32 %v410, %v305
        %v427 = vtanh.pop %v411
        %v428 = vtanh.pop %v412
        %v429 = vtanh.pop %v413
        %v430 = vtanh.pop %v414
        %v431 = vtanh.pop %v415
        %v432 = vtanh.pop %v416
        %v433 = vtanh.pop %v417
        %v434 = vtanh.pop %v418
        %v435 = vtanh.pop %v419
        %v436 = vtanh.pop %v420
        %v437 = vtanh.pop %v421
        %v438 = vtanh.pop %v422
        %v439 = vtanh.pop %v423
        %v440 = vtanh.pop %v424
        %v441 = vtanh.pop %v425
        %v442 = vtanh.pop %v426
        %444 = vset.pattern.permute.xlu0 0
        %445 = vperm.xlu0 %444, %v307
        %v446 = vpop.permute.xlu0 %445
        %449 = vset.pattern.permute.xlu0 0
        %450 = vperm.xlu0 %449, %v308
        %v451 = vpop.permute.xlu0 %450
        %454 = vset.pattern.permute.xlu0 0
        %455 = vperm.xlu0 %454, %v309
        %v456 = vpop.permute.xlu0 %455
        %459 = vset.pattern.permute.xlu0 0
        %460 = vperm.xlu0 %459, %v310
        %v461 = vpop.permute.xlu0 %460
        %v463 = vmul.f32 %v427, %v446
        %v464 = vmul.f32 %v428, %v451
        %v465 = vmul.f32 %v429, %v456
        %v466 = vmul.f32 %v430, %v461
        %v467 = vmul.f32 %v431, %v446
        %v468 = vmul.f32 %v432, %v451
        %v469 = vmul.f32 %v433, %v456
        %v470 = vmul.f32 %v434, %v461
        %v471 = vmul.f32 %v435, %v446
        %v472 = vmul.f32 %v436, %v451
        %v473 = vmul.f32 %v437, %v456
        %v474 = vmul.f32 %v438, %v461
        %v475 = vmul.f32 %v439, %v446
        %v476 = vmul.f32 %v440, %v451
        %v477 = vmul.f32 %v441, %v456
        %v478 = vmul.f32 %v442, %v461
        %vm479 = vcmask 64512
        %v480 = vsel %vm479, %v463, 0.0
        %v481 = vsel %vm479, %v464, 0.0
        %v482 = vadd.f32 %v480, %v481
        %v483 = vsel %vm479, %v465, 0.0
        %v484 = vadd.f32 %v482, %v483
        %v485 = vsel %vm479, %v466, 0.0
        %v486 = vadd.f32 %v484, %v485
        %v487 = vrot.slane %v486, 4
        %v488 = vadd.f32 %v486, %v487
        %v489 = vrot.slane %v488, 2
        %v490 = vadd.f32 %v488, %v489
        %v491 = vrot.slane %v490, 1
        %v492 = vadd.f32 %v490, %v491
        %v493 = vsel %vm479, %v467, 0.0
        %v494 = vsel %vm479, %v468, 0.0
        %v495 = vadd.f32 %v493, %v494
        %v496 = vsel %vm479, %v469, 0.0
        %v497 = vadd.f32 %v495, %v496
        %v498 = vsel %vm479, %v470, 0.0
        %v499 = vadd.f32 %v497, %v498
        %v500 = vrot.slane %v499, 4
        %v501 = vadd.f32 %v499, %v500
        %v502 = vrot.slane %v501, 2
        %v503 = vadd.f32 %v501, %v502
        %v504 = vrot.slane %v503, 1
        %v505 = vadd.f32 %v503, %v504
        %v506 = vsel %vm479, %v471, 0.0
        %v507 = vsel %vm479, %v472, 0.0
        %v508 = vadd.f32 %v506, %v507
        %v509 = vsel %vm479, %v473, 0.0
        %v510 = vadd.f32 %v508, %v509
        %v511 = vsel %vm479, %v474, 0.0
        %v512 = vadd.f32 %v510, %v511
        %v513 = vrot.slane %v512, 4
        %v514 = vadd.f32 %v512, %v513
        %v515 = vrot.slane %v514, 2
        %v516 = vadd.f32 %v514, %v515
        %v517 = vrot.slane %v516, 1
        %v518 = vadd.f32 %v516, %v517
        %v519 = vsel %vm479, %v475, 0.0
        %v520 = vsel %vm479, %v476, 0.0
        %v521 = vadd.f32 %v519, %v520
        %v522 = vsel %vm479, %v477, 0.0
        %v523 = vadd.f32 %v521, %v522
        %v524 = vsel %vm479, %v478, 0.0
        %v525 = vadd.f32 %v523, %v524
        %v526 = vrot.slane %v525, 4
        %v527 = vadd.f32 %v525, %v526
        %v528 = vrot.slane %v527, 2
        %v529 = vadd.f32 %v527, %v528
        %v530 = vrot.slane %v529, 1
        %v531 = vadd.f32 %v529, %v530
        %s532 = sld [smem:[#allocation6 + %s32]]
        %s533 = smul.u32 %s34, 8
        %v534 = vlaneseq
        %v535 = vand.u32 %v534, 127
        %v536 = vstv %s533
        %v537 = vadd.s32 %v536, %v535
        %v538 = vstv %s532
        %vm539 = vcmp.lt.s32.totalorder %v537, %v538
        %vm544 = vcmask 1041409
        %v545 = vsel %vm544, %v505, %v492
        %vm546 = vcmask 1042434
        %v547 = vsel %vm546, %v518, %v545
        %vm548 = vcmask 1043459
        %v549 = vsel %vm548, %v531, %v547
        %v551 = vsel %vm539, %v549, -1000000.0
        %v552 = vld [vmem:[#allocation2] sm:$0xf]
        %vm553 = vcmask 60416
        %v554 = vsel %vm553, %v551, -inf
        %555 = vmax.xlane.f32.xlu0 %v554
        %v556 = vpop.xlane.xlu0 %555
        %v557 = vmax.f32 %v552, %v556
        %v558 = vsub.f32 %v552, %v557
        %v559 = vmul.f32 %v558, 1.442695
        %v560 = vpow.pop %v559
        %562 = vset.pattern.permute.xlu0 0
        %563 = vperm.xlu0 %562, %v557
        %v564 = vpop.permute.xlu0 %563
        %v566 = vsub.f32 %v551, %v564
        %v567 = vmul.f32 %v566, 1.442695
        %v568 = vpow.pop %v567
        %v569 = vld [vmem:[#allocation3] sm:$0xf]
        %v570 = vmul.f32 %v560, %v569
        %v571 = vsel %vm553, %v568, 0.0
        %572 = vadd.xlane.f32.xlu0 %v571
        %v573 = vpop.xlane.xlu0 %572
        %v574 = vadd.f32 %v570, %v573
        %vm575 = vcmask 3072
        %576 = vst.msk [vmem:[#allocation3] sm:$0xf] %vm575, %v574
        %v577 = vld [vmem:[#allocation4] sm:$0xf]
        %579 = vset.pattern.permute.xlu0 0
        %580 = vperm.xlu0 %579, %v560
        %v581 = vpop.permute.xlu0 %580
        %v583 = vmul.f32 %v581, %v577
        %v585 = vsel %vm479, %v568, 0
        %587 = vmatpush.msra.mxu0 0.0
        %588 = vmatpush.msra.mxu0 0.0
        %589 = vmatpush.msra.mxu0 0.0
        %590 = vmatpush.msra.mxu0 0.0
        %591 = vmatpush.msra.mxu0 0.0
        %592 = vmatpush.msra.mxu0 0.0
        %593 = vmatpush.msra.mxu0 0.0
        %594 = vmatpush.msra.mxu0 0.0
        %595 = vmatpush.msra.mxu0 0.0
        %596 = vmatpush.msra.mxu0 0.0
        %597 = vmatpush.msra.mxu0 0.0
        %598 = vmatpush.msra.mxu0 0.0
        %599 = vmatpush.msra.mxu0 0.0
        %600 = vmatpush.msra.mxu0 0.0
        %601 = vmatpush.msra.mxu0 0.0
        %602 = vmatpush.msra.mxu0 %v306
        %603 = vmatmul.f32.gmra.mxu0 %v585
        %v604 = vpop.f32.mrf.mxu0
        %v605 = vadd.f32 0.0, %v604
        %606 = vdwg.mxu0
        %v607 = vadd.f32 %v583, %v605
        %608 = vst [vmem:[#allocation4] sm:$0xf] %v607
        %609 = vst.msk [vmem:[#allocation2] sm:$0xf] %vm575, %v557
        // Predicated region
        $region41: #{additive_attention.1} parent=35 // pred_check
          %p610 = pneg %p293
        $region42: #{additive_attention.1} parent=35 // pred_check_branch
          %612 = sbr.rel (%p610) target = $region44
        $region43: #{additive_attention.1} parent=35 // pred_region
          %v613 = vld [vmem:[#allocation3] sm:$0xf]
          %v614 = vrcp.pop %v613
          %v615 = vld [vmem:[#allocation4] sm:$0xf]
          %617 = vset.pattern.permute.xlu0 0
          %618 = vperm.xlu0 %617, %v614
          %v619 = vpop.permute.xlu0 %618
          %v621 = vmul.f32 %v615, %v619
          %622 = vst [vmem:[%s270] sm:$0xf] %v621
        $region44: #{additive_attention.1} parent=35 // pred_fallthru
          _
        %s623 = sand.u32 %s161, 1
        %s624 = scalar_lea.sflag [#allocation8], %s623
        %s625 = sand.u32 %s161, 1
        %s626 = smul.addr %s625, 4
        %s627 = scalar_lea.vmem [#allocation7], %s626
        // Predicated region
        $region45: #{additive_attention.1} parent=35 // pred_check
          %p628 = pneg %p171
        $region46: #{additive_attention.1} parent=35 // pred_check_branch
          %630 = sbr.rel (%p628) target = $region48
        $region47: #{additive_attention.1} parent=35 // pred_region
          %632 = vsyncadd %s624, 0
          %s633 = sadd.s32 %s33, %s32
          %s634 = smul.addr %s633, 4
          %s635 = scalar_lea.hbm %s5, %s634
          %s637 = sshll.u32 %s627, 4
          %s638 = int_to_ptr.vmem [resolvable:$true] %s637
          %s639 = sshll.u32 %s635, 4
          %s640 = int_to_ptr.hbm [resolvable:$true] %s639
          %642 = dma.vmem_to_hbm [thread:$0]  %s638, 64, %s640, %s624
        $region48: #{additive_attention.1} parent=35 // pred_fallthru
          _
      $region36: #{additive_attention.1} parent=5 // pred_fallthru
        _
      %p643 = scmp.le.s32.totalorder 2, %s22
      // Predicated region
      $region49: #{additive_attention.1} parent=5 // pred_check
        %p644 = pneg %p643
      $region50: #{additive_attention.1} parent=5 // pred_check_branch
        %646 = sbr.rel (%p644) target = $region52
      $region51: #{additive_attention.1} parent=5 // pred_region
        %s647 = ssub.s32 %s22, 2
        // Predicated region
        $region53: #{additive_attention.1} parent=51 // pred_check
          %p648 = pneg %p177
        $region54: #{additive_attention.1} parent=51 // pred_check_branch
          %650 = sbr.rel (%p648) target = $region56
        $region55: #{additive_attention.1} parent=51 // pred_region
          %s651 = sand.u32 %s162, 1
          %s652 = scalar_lea.sflag [#allocation8], %s651
          %s653 = sand.u32 %s162, 1
          %s654 = smul.addr %s653, 4
          %s655 = scalar_lea.vmem [#allocation7], %s654
          %657 = dma.done %s652, 64
        $region56: #{additive_attention.1} parent=51 // pred_fallthru
          _
      $region52: #{additive_attention.1} parent=5 // pred_fallthru
        _
    $region6: #{additive_attention.1} parent=1 // loop_footer
      %s26 = sadd.s32 1, %s22
    $region7: #{additive_attention.1} parent=1 // loop_footer_branch
      %21 = sbr.rel target = $region3
    $region8: #{additive_attention.1} parent=1 // loop_exit
      _
    %658 = vsyncpa [#allocation8], 1
    %s659 = scalar_lea.sflag [#allocation8], 1
    %660 = vsyncpa %s659, 1

</llo_original>
